<compile_context>
chip_gen: v6e
topology: v6e:2x2x1
jax: 0.10.0
libtpu: 0.0.40
codegen_flags: <defaults>
</compile_context>

<pallas_src>
import jax
import jax.numpy as jnp
from jax.experimental import pallas as pl
from jax.experimental.pallas import tpu as pltpu

SC_PRIMITIVES = ["none", "skip"]

_LANE = 128    # vreg lane width
_SUBLANE = 8   # vreg sublane count (f32)


def sc_mixed_kernel(w_ref, x_ref, o_ref):
    """Mixed skip-connection op collapsed to a single scalar*tensor multiply.

    o = w[0] * Zero(x) + w[1] * Identity(x)  ==  (w[0]*0 + w[1]) * x
    """
    scale = w_ref[0] * 0.0 + w_ref[1]   # scalar in SMEM/sreg
    o_ref[...] = scale * x_ref[...]


def _round_up(v, m):
    return ((v + m - 1) // m) * m


def sc_mixed_op(x, weights, *, max_tile_rows=1024):
    """Pallas wrapper.

    x: arbitrary-shape float array (node-feature matrix [N, F] in the module),
    weights: [len(SC_PRIMITIVES)] architecture weights.
    Internally flattens x to a lane-dense [rows, 128] slab.
    """
    orig_shape = x.shape
    total = x.size

    # Lane-dense reshape: flatten, pad to a whole number of (tile_rows, 128) blocks.
    rows_needed = pl.cdiv(total, _LANE)
    tile_rows = min(max_tile_rows, _round_up(max(rows_needed, 1), _SUBLANE))
    padded_rows = _round_up(max(rows_needed, 1), tile_rows)
    padded_total = padded_rows * _LANE

    x_flat = x.reshape(-1)
    if padded_total != total:
        x_flat = jnp.pad(x_flat, (0, padded_total - total))
    x2 = x_flat.reshape(padded_rows, _LANE)

    grid = (padded_rows // tile_rows,)

    out2 = pl.pallas_call(
        sc_mixed_kernel,
        out_shape=jax.ShapeDtypeStruct((padded_rows, _LANE), x.dtype),
        grid=grid,
        in_specs=[
            # architecture weights: tiny vector, keep in SMEM, untiled
            pl.BlockSpec(memory_space=pltpu.MemorySpace.SMEM),
            # lane-dense row tiles: (tile_rows, 128) — last two dims (8,128)-aligned
            pl.BlockSpec((tile_rows, _LANE), lambda i: (i, 0)),
        ],
        out_specs=pl.BlockSpec((tile_rows, _LANE), lambda i: (i, 0)),
        compiler_params=pltpu.CompilerParams(
            # parallel row axis: no-op on v5e/v6e (1 TC), shards across 2 TCs on v7x
            dimension_semantics=("parallel",)
        ),
    )(weights, x2)

    return out2.reshape(-1)[:total].reshape(orig_shape)


if __name__ == "__main__":
    key = jax.random.PRNGKey(0)
    kx, kw = jax.random.split(key)

    # Small shapes consistent with the module: 16 graph nodes, hidden=32.
    N, F = 16, 32
    x = jax.random.normal(kx, (N, F), dtype=jnp.float32)
    # architecture weights over SC_PRIMITIVES (softmax-normalized, as in NAS search)
    weights = jax.nn.softmax(
        jax.random.normal(kw, (len(SC_PRIMITIVES),), dtype=jnp.float32)
    )

    out = jax.block_until_ready(sc_mixed_op(x, weights))

    # reference: w_none * (x*0) + w_skip * x
    ref = weights[0] * (x * 0.0) + weights[1] * x
    assert out.shape == (N, F)
    assert jnp.allclose(out, ref, atol=1e-6, rtol=1e-6)

    print("KERNEL_OK")
</pallas_src>

<mosaic_0001>
module attributes {stable_mosaic.version = 11 : i64} {
  func.func @sc_mixed_kernel(%arg0: i32, %arg1: memref<2xf32, #tpu.memory_space<smem>>, %arg2: memref<8x128xf32, #tpu.memory_space<vmem>>, %arg3: memref<8x128xf32, #tpu.memory_space<vmem>>) attributes {dimension_semantics = [#tpu.dimension_semantics<parallel>], iteration_bounds = array<i64: 1>, scalar_prefetch = 0 : i64, scratch_operands = 0 : i64, tpu.core_type = #tpu.core_type<tc>, window_params = [{transform_indices = @transform_0, window_bounds = array<i64: 2>}, {transform_indices = @transform_1, window_bounds = array<i64: 8, 128>}, {transform_indices = @transform_2, window_bounds = array<i64: 8, 128>}]} {
    %c0 = arith.constant 0 : index
    %0 = memref.load %arg1[%c0] : memref<2xf32, #tpu.memory_space<smem>>
    %cst = arith.constant 0.000000e+00 : f32
    %1 = arith.mulf %0, %cst : f32
    %c1 = arith.constant 1 : index
    %2 = memref.load %arg1[%c1] : memref<2xf32, #tpu.memory_space<smem>>
    %3 = arith.addf %1, %2 : f32
    %c0_0 = arith.constant 0 : index
    %c0_1 = arith.constant 0 : index
    %4 = vector.load %arg2[%c0_0, %c0_1] : memref<8x128xf32, #tpu.memory_space<vmem>>, vector<8x128xf32>
    %5 = vector.broadcast %3 : f32 to vector<8x128xf32>
    %6 = arith.mulf %5, %4 : vector<8x128xf32>
    %c0_2 = arith.constant 0 : index
    %c0_3 = arith.constant 0 : index
    %7 = vector.load %arg3[%c0_2, %c0_3] : memref<8x128xf32, #tpu.memory_space<vmem>>, vector<8x128xf32>
    tpu.vector_store %arg3[%c0_2, %c0_3], %6 {strides = array<i32>} : memref<8x128xf32, #tpu.memory_space<vmem>>, vector<8x128xf32>,
    return
  }
  func.func @transform_0(%arg0: i32) -> i32 {
    %c0_i32 = arith.constant 0 : i32
    %c0_i32_0 = arith.constant 0 : i32
    return %c0_i32 : i32
  }
  func.func @transform_1(%arg0: i32) -> (i32, i32) {
    %c0_i32 = arith.constant 0 : i32
    %c0_i32_0 = arith.constant 0 : i32
    return %arg0, %c0_i32 : i32, i32
  }
  func.func @transform_2(%arg0: i32) -> (i32, i32) {
    %c0_i32 = arith.constant 0 : i32
    %c0_i32_0 = arith.constant 0 : i32
    return %arg0, %c0_i32 : i32, i32
  }
}

</mosaic_0001>

<llo_original>
// kernel: tpu_custom_call.1
$region0: #{tpu_custom_call.1}
  #allocation0 [shape = 'u32[]', space=smem, size = 0x4, offset = 0x4, fixed_abs, tag = 'smem constant byte address 0x4 - core index']
  #allocation1 [shape = 'u32[144,128]{1,0:T(1,128)}', space=vmem, size = 0x12000, scoped, tag = 'internal scratch']
  %s0 = inlined_call_operand.hbm [shape: f32[2], index: 0, kind: input, shape index: {}]
  %s1 = inlined_call_operand.hbm [shape: f32[8,128], index: 1, kind: input, shape index: {}]
  %s2 = inlined_call_operand.hbm [shape: f32[8,128], index: 2, kind: output, shape index: {}]
  %s3 = sld [smem:[#allocation0]]
  $region26: #{tpu_custom_call.1} parent=0
    _
  %s5 = ssub.s32 1, %s3
  %s6 = scalar_select 0, %s5, %s3
  $region1: #{tpu_custom_call.1} parent=0
    #allocation2 [shape = 'u8[512]{0}', space=smem, size = 0x200, scoped, tag = 'input window, operand 0, single buffered']
    #allocation3 [shape = 's32[1]{0}', space=sflag, size = 0x4, scoped, tag = 'scoped memory for tpu_custom_call.1']
    #allocation4 [shape = 's32[1]{0}', space=sflag, size = 0x4, scoped, tag = 'scoped memory for tpu_custom_call.1']
    #allocation5 [shape = 's32[1]{0}', space=sflag, size = 0x4, scoped, tag = 'scoped memory for tpu_custom_call.1']
    #allocation6 [shape = 'u8[4096]{0}', space=vmem, size = 0x1000, scoped, tag = 'input window, operand 1, single buffered']
    #allocation7 [shape = 'u8[4096]{0}', space=vmem, size = 0x1000, scoped, tag = 'output window, operand 0, single buffered']
    %7 = vsyncpa [#allocation5], 0
    %8 = vsyncpa [#allocation3], 0
    %9 = vsyncpa [#allocation4], 0
    // Predicated region
    $region2: #{tpu_custom_call.1} parent=1 // pred_check
      _
    $region3: #{tpu_custom_call.1} parent=1 // pred_check_branch
      %11 = sbr.rel (0) target = $region5
    $region4: #{tpu_custom_call.1} parent=1 // pred_region
      %s13 = ssub.s32 16, 16
      %14 = vsyncadd [#allocation5], %s13
      %17 = dma.hbm_to_smem %s0, 16, [#allocation2], [#allocation5]
    $region5: #{tpu_custom_call.1} parent=1 // pred_fallthru
      _
    // Predicated region
    $region6: #{tpu_custom_call.1} parent=1 // pred_check
      _
    $region7: #{tpu_custom_call.1} parent=1 // pred_check_branch
      %19 = sbr.rel (0) target = $region9
    $region8: #{tpu_custom_call.1} parent=1 // pred_region
      %s21 = ssub.s32 128, 128
      %22 = vsyncadd [#allocation3], %s21
      %s24 = sshll.u32 [#allocation6], 4
      %s25 = int_to_ptr.vmem [resolvable:$true] %s24
      %27 = dma.hbm_to_vmem [thread:$0]  %s1, 128, %s25, [#allocation3]
    $region9: #{tpu_custom_call.1} parent=1 // pred_fallthru
      _
    // Predicated region
    $region10: #{tpu_custom_call.1} parent=1 // pred_check
      _
    $region11: #{tpu_custom_call.1} parent=1 // pred_check_branch
      %29 = sbr.rel (0) target = $region13
    $region12: #{tpu_custom_call.1} parent=1 // pred_region
      %30 = dma.done [#allocation5], 16
    $region13: #{tpu_custom_call.1} parent=1 // pred_fallthru
      _
    // Predicated region
    $region14: #{tpu_custom_call.1} parent=1 // pred_check
      _
    $region15: #{tpu_custom_call.1} parent=1 // pred_check_branch
      %32 = sbr.rel (0) target = $region17
    $region16: #{tpu_custom_call.1} parent=1 // pred_region
      %33 = dma.done [#allocation3], 128
    $region17: #{tpu_custom_call.1} parent=1 // pred_fallthru
      _
    %34 = sfence
    %s35 = sld [smem:[#allocation2]]
    %s36 = smul.f32 %s35, 0.0
    %s37 = sld [smem:[#allocation2 + $0x1]]
    %s38 = sadd.f32 %s36, %s37
    %v39 = vld [vmem:[#allocation6] sm:$0xff]
    %v40 = vstv %s38
    %v41 = vmul.f32 %v40, %v39
    %42 = vst [vmem:[#allocation7] sm:$0xff] %v41
    // Predicated region
    $region18: #{tpu_custom_call.1} parent=1 // pred_check
      _
    $region19: #{tpu_custom_call.1} parent=1 // pred_check_branch
      %44 = sbr.rel (0) target = $region21
    $region20: #{tpu_custom_call.1} parent=1 // pred_region
      %s46 = ssub.s32 128, 128
      %47 = vsyncadd [#allocation4], %s46
      %s49 = sshll.u32 [#allocation7], 4
      %s50 = int_to_ptr.vmem [resolvable:$true] %s49
      %52 = dma.vmem_to_hbm [thread:$0]  %s50, 128, %s2, [#allocation4]
    $region21: #{tpu_custom_call.1} parent=1 // pred_fallthru
      _
    // Predicated region
    $region22: #{tpu_custom_call.1} parent=1 // pred_check
      _
    $region23: #{tpu_custom_call.1} parent=1 // pred_check_branch
      %54 = sbr.rel (0) target = $region25
    $region24: #{tpu_custom_call.1} parent=1 // pred_region
      %55 = dma.done [#allocation4], 128
    $region25: #{tpu_custom_call.1} parent=1 // pred_fallthru
      _
    %56 = vsyncpa [#allocation3], 1
    %57 = vsyncpa [#allocation4], 1
    %58 = vsyncpa [#allocation5], 1

</llo_original>
